<compile_context>
chip_gen: v7x
topology: tpu7x:2x2x1
jax: 0.10.0
libtpu: 0.0.40
codegen_flags: <defaults>
</compile_context>

<pallas_src>
import functools

import jax
import jax.numpy as jnp
from jax import lax
from jax.experimental import pallas as pl
from jax.experimental.pallas import tpu as pltpu

LANE = 128


def _round_up(x, m):
    return (x + m - 1) // m * m


# -----------------------------------------------------------------------------
# One-time parameter relayout (torch layout -> kernel layout).
# -----------------------------------------------------------------------------
def prepare_params(weight, bias, h_dim, param_dtype=None):
    """weight: (5H, 2H) torch nn.Linear layout; bias: (5H,).

    Returns (w, bias2d):
      w      : (2*Hp, 5*Hp) -- stacked [W_left; W_right] of W^T, gate blocks
                               padded so gate k occupies columns [k*Hp,(k+1)*Hp).
      bias2d : (1, 5*Hp)    -- same gate-aligned column layout.
    Pass param_dtype=jnp.bfloat16 to halve weight DMA / VMEM residency (the
    kernel still accumulates the matmul in f32).
    """
    H = h_dim
    Hp = _round_up(max(H, LANE), LANE)

    wt = weight.T                     # (2H, 5H): rows = inputs, cols = gate-major outs

    def pad_half(w):                  # w: (H, 5H)
        w5 = w.reshape(H, 5, H)                               # (in, gate, feat)
        w5 = jnp.pad(w5, ((0, Hp - H), (0, 0), (0, Hp - H)))  # zero-pad in/feat
        return w5.reshape(Hp, 5 * Hp)

    w = jnp.concatenate([pad_half(wt[:H]), pad_half(wt[H:])], axis=0)  # (2Hp, 5Hp)
    b = jnp.pad(bias.reshape(5, H), ((0, 0), (0, Hp - H))).reshape(1, 5 * Hp)

    if param_dtype is not None:
        w = w.astype(param_dtype)
    return w, b


# -----------------------------------------------------------------------------
# Kernel body: one block of tree nodes (tile_n, Hp) per grid step.
# -----------------------------------------------------------------------------
def _tree_lstm_kernel(hlr_ref, cl_ref, cr_ref, w_ref, b_ref, h_out_ref, c_out_ref):
    Hp = h_out_ref.shape[-1]

    # One fused K=2*Hp MXU contraction, f32 accumulation, native operand dtype.
    z = jnp.dot(hlr_ref[...], w_ref[...], preferred_element_type=jnp.float32)
    z = z + b_ref[...].astype(jnp.float32)                    # (tile_n, 5*Hp)

    # sigmoid(x) = 0.5*(tanh(0.5*x)+1): one EUP op per gate instead of exp+rcp.
    def sig(x):
        return 0.5 * (jnp.tanh(0.5 * x) + 1.0)

    # Gate blocks are 128-lane aligned (Hp is a multiple of 128): pure views.
    g   = jnp.tanh(z[:, 0 * Hp:1 * Hp])
    i   = sig(z[:, 1 * Hp:2 * Hp])
    f_l = sig(z[:, 2 * Hp:3 * Hp])
    f_r = sig(z[:, 3 * Hp:4 * Hp])
    o   = sig(z[:, 4 * Hp:5 * Hp])

    c_l = cl_ref[...].astype(jnp.float32)
    c_r = cr_ref[...].astype(jnp.float32)

    c = i * g + f_l * c_l + f_r * c_r
    h = o * jnp.tanh(c)

    # NOTE: if states are carried in bf16 across deep trees, keep c in f32 at
    # the call site (here c_out simply inherits the input state dtype).
    h_out_ref[...] = h.astype(h_out_ref.dtype)
    c_out_ref[...] = c.astype(c_out_ref.dtype)


def _pick_tile_n(n_nodes, requested):
    """Node-block rows: multiple of 8, capped at the problem, >=2 grid steps
    when there is enough work (v7x has 2 TensorCores) but never below the
    MXU-amortization point (~128 rows)."""
    np8 = _round_up(n_nodes, 8)
    t = max(8, min(_round_up(requested, 8), np8))
    if np8 >= 256 and _round_up(n_nodes, t) // t < 2:
        t = max(128, _round_up((n_nodes + 1) // 2, 8))
    return t


# -----------------------------------------------------------------------------
# Wrapper: batches N tree nodes (one tree level) into one gridded pallas_call.
# -----------------------------------------------------------------------------
@functools.partial(jax.jit, static_argnames=("tile_n",))
def binary_tree_lstm_cell(h_l, c_l, h_r, c_r, w, bias2d, *, tile_n=256):
    """h_l/c_l/h_r/c_r: (N, H). w: (2*Hp, 5*Hp), bias2d: (1, 5*Hp).

    Returns (h, c), each (N, H).
    """
    N, H = h_l.shape
    Hp = w.shape[0] // 2

    tile = _pick_tile_n(N, tile_n)
    Np = _round_up(N, tile)
    grid = (Np // tile,)

    needs_pad = (Np != N) or (Hp != H)
    if needs_pad:
        def pad_state(x):
            return jnp.pad(x, ((0, Np - N), (0, Hp - H)))
        # The concat fuses with the padding copy we already pay; it feeds the
        # MXU a single K=2*Hp contraction.
        h_lr = jnp.concatenate([pad_state(h_l), pad_state(h_r)], axis=-1)
        cl, cr = pad_state(c_l), pad_state(c_r)
    else:
        h_lr = jnp.concatenate([h_l, h_r], axis=-1)
        cl, cr = c_l, c_r

    bpe = jnp.dtype(h_l.dtype).itemsize
    w_bpe = jnp.dtype(w.dtype).itemsize
    w_bytes = 2 * Hp * 5 * Hp * w_bpe

    # Single-buffer the VMEM-resident parameters once double-buffering them
    # would cost real VMEM (critical for large H on v7x's 64 MiB).
    param_mode = pl.Buffered(1) if w_bytes > (4 << 20) else None
    param_bufs = 1 if param_mode is not None else 2

    state_spec = pl.BlockSpec((tile, 2 * Hp), lambda i: (i, 0))
    c_spec = pl.BlockSpec((tile, Hp), lambda i: (i, 0))
    # Constant block index -> weight/bias stay VMEM-resident across grid steps.
    w_spec = pl.BlockSpec((2 * Hp, 5 * Hp), lambda i: (0, 0), pipeline_mode=param_mode)
    b_spec = pl.BlockSpec((1, 5 * Hp), lambda i: (0, 0), pipeline_mode=param_mode)
    out_spec = pl.BlockSpec((tile, Hp), lambda i: (i, 0))

    # Size the scoped-VMEM limit from the actual footprint (+ slack).
    vmem_bytes = (param_bufs * (2 * Hp * 5 * Hp + 5 * Hp) * w_bpe   # weight + bias
                  + 2 * (2 * Hp + 2 * Hp) * tile * bpe              # double-buffered ins
                  + 2 * (2 * Hp) * tile * bpe                       # double-buffered outs
                  + 2 * 5 * Hp * tile * 4                           # z + gate temps (f32)
                  + (2 << 20))                                      # slack
    vmem_limit = int(min(max(vmem_bytes, 16 << 20), 128 << 20))

    cost = pl.CostEstimate(
        flops=int(2 * Np * (2 * Hp) * (5 * Hp)),
        transcendentals=int(6 * Np * Hp),            # 1 tanh(g) + 4 tanh-sigmoids + tanh(c)
        bytes_accessed=int(6 * Np * Hp * bpe         # h_lr + c_l + c_r in, h + c out
                           + 2 * Hp * 5 * Hp * w_bpe
                           + 5 * Hp * w_bpe),
    )

    h, c = pl.pallas_call(
        _tree_lstm_kernel,
        out_shape=(jax.ShapeDtypeStruct((Np, Hp), h_l.dtype),
                   jax.ShapeDtypeStruct((Np, Hp), c_l.dtype)),
        grid=grid,
        in_specs=[state_spec, c_spec, c_spec, w_spec, b_spec],
        out_specs=(out_spec, out_spec),
        compiler_params=pltpu.CompilerParams(
            dimension_semantics=("parallel",),        # v7x: shard node blocks over 2 TCs
            vmem_limit_bytes=vmem_limit,
        ),
        cost_estimate=cost,
    )(h_lr, cl, cr, w, bias2d)

    if needs_pad:
        return h[:N, :H], c[:N, :H]
    return h, c


# -----------------------------------------------------------------------------
# Pure-JAX reference (torch-layout parameters).
# -----------------------------------------------------------------------------
def _reference(h_l, c_l, h_r, c_r, weight, bias):
    H = h_l.shape[-1]
    h_lr = jnp.concatenate([h_l, h_r], axis=-1)
    z = jnp.dot(h_lr, weight.T, precision=lax.Precision.HIGHEST) + bias
    g, i, f_l, f_r, o = [z[:, k * H:(k + 1) * H] for k in range(5)]
    g = jnp.tanh(g)
    i, f_l, f_r, o = map(jax.nn.sigmoid, (i, f_l, f_r, o))
    c = i * g + f_l * c_l + f_r * c_r
    h = o * jnp.tanh(c)
    return h, c


if __name__ == "__main__":
    H = 32          # hidden_dim of the cell
    N = 32          # number of tree nodes processed in one call (one tree level)

    key = jax.random.PRNGKey(0)
    k_w, k_hl, k_cl, k_hr, k_cr = jax.random.split(key, 5)

    # reset_parameters(): orthogonal weight (5H, 2H); bias = 0, bias[2H:4H] = 1.
    weight = jax.nn.initializers.orthogonal()(k_w, (5 * H, 2 * H), jnp.float32)
    bias = jnp.zeros((5 * H,), jnp.float32).at[2 * H:4 * H].set(1.0)

    h_l = jax.random.normal(k_hl, (N, H), jnp.float32)
    c_l = jax.random.normal(k_cl, (N, H), jnp.float32)
    h_r = jax.random.normal(k_hr, (N, H), jnp.float32)
    c_r = jax.random.normal(k_cr, (N, H), jnp.float32)

    # One-time parameter relayout (stacked halves, gate-aligned padding).
    # param_dtype=jnp.bfloat16 halves weight DMA/VMEM for large H; f32 here for
    # a tight numerical check.
    w_p, b2d = prepare_params(weight, bias, H)
    w_p, b2d = jax.block_until_ready((w_p, b2d))

    h, c = binary_tree_lstm_cell(h_l, c_l, h_r, c_r, w_p, b2d)
    jax.block_until_ready((h, c))

    h_ref, c_ref = _reference(h_l, c_l, h_r, c_r, weight, bias)
    assert h.shape == (N, H) and c.shape == (N, H)
    assert jnp.allclose(h, h_ref, atol=5e-3, rtol=5e-3), "h mismatch"
    assert jnp.allclose(c, c_ref, atol=5e-3, rtol=5e-3), "c mismatch"

    print("KERNEL_OK")
</pallas_src>

<mosaic_0001>
module attributes {stable_mosaic.version = 11 : i64} {
  func.func @_tree_lstm_kernel(%arg0: i32, %arg1: memref<32x256xf32, #tpu.memory_space<vmem>>, %arg2: memref<32x128xf32, #tpu.memory_space<vmem>>, %arg3: memref<32x128xf32, #tpu.memory_space<vmem>>, %arg4: memref<256x640xf32, #tpu.memory_space<vmem>>, %arg5: memref<1x640xf32, #tpu.memory_space<vmem>>, %arg6: memref<32x128xf32, #tpu.memory_space<vmem>>, %arg7: memref<32x128xf32, #tpu.memory_space<vmem>>) attributes {dimension_semantics = [#tpu.dimension_semantics<parallel>], iteration_bounds = array<i64: 1>, scalar_prefetch = 0 : i64, scratch_operands = 0 : i64, tpu.core_type = #tpu.core_type<tc>, window_params = [{transform_indices = @transform_0, window_bounds = array<i64: 32, 256>}, {transform_indices = @transform_1, window_bounds = array<i64: 32, 128>}, {transform_indices = @transform_2, window_bounds = array<i64: 32, 128>}, {pipeline_mode = #tpu.pipeline_mode<synchronous>, transform_indices = @transform_3, window_bounds = array<i64: 256, 640>}, {pipeline_mode = #tpu.pipeline_mode<synchronous>, transform_indices = @transform_4, window_bounds = array<i64: 1, 640>}, {transform_indices = @transform_5, window_bounds = array<i64: 32, 128>}, {transform_indices = @transform_6, window_bounds = array<i64: 32, 128>}]} {
    %c0 = arith.constant 0 : index
    %c0_0 = arith.constant 0 : index
    %0 = vector.load %arg1[%c0, %c0_0] : memref<32x256xf32, #tpu.memory_space<vmem>>, vector<32x256xf32>
    %c0_1 = arith.constant 0 : index
    %c0_2 = arith.constant 0 : index
    %1 = vector.load %arg4[%c0_1, %c0_2] : memref<256x640xf32, #tpu.memory_space<vmem>>, vector<256x640xf32>
    %cst = arith.constant dense<0.000000e+00> : vector<32x640xf32>
    %2 = tpu.matmul %0, %1, %cst {dimension_numbers = #tpu.dot_dimension_numbers<[1], [0], [0], [1], [0, 0, 1, 1], [], []>} : vector<32x256xf32>, vector<256x640xf32>, vector<32x640xf32> -> vector<32x640xf32>
    %c0_3 = arith.constant 0 : index
    %c0_4 = arith.constant 0 : index
    %3 = vector.load %arg5[%c0_3, %c0_4] : memref<1x640xf32, #tpu.memory_space<vmem>>, vector<1x640xf32>
    %4 = vector.broadcast %3 : vector<1x640xf32> to vector<32x640xf32>
    %5 = arith.addf %2, %4 : vector<32x640xf32>
    %6 = vector.extract_strided_slice %5 {offsets = [0, 0], sizes = [32, 128], strides = [1, 1]} : vector<32x640xf32> to vector<32x128xf32>
    %7 = math.tanh %6 : vector<32x128xf32>
    %8 = vector.extract_strided_slice %5 {offsets = [0, 128], sizes = [32, 128], strides = [1, 1]} : vector<32x640xf32> to vector<32x128xf32>
    %cst_5 = arith.constant 5.000000e-01 : f32
    %9 = vector.broadcast %cst_5 : f32 to vector<32x128xf32>
    %10 = arith.mulf %9, %8 : vector<32x128xf32>
    %11 = math.tanh %10 : vector<32x128xf32>
    %cst_6 = arith.constant 1.000000e+00 : f32
    %12 = vector.broadcast %cst_6 : f32 to vector<32x128xf32>
    %13 = arith.addf %11, %12 : vector<32x128xf32>
    %cst_7 = arith.constant 5.000000e-01 : f32
    %14 = vector.broadcast %cst_7 : f32 to vector<32x128xf32>
    %15 = arith.mulf %14, %13 : vector<32x128xf32>
    %16 = vector.extract_strided_slice %5 {offsets = [0, 256], sizes = [32, 128], strides = [1, 1]} : vector<32x640xf32> to vector<32x128xf32>
    %cst_8 = arith.constant 5.000000e-01 : f32
    %17 = vector.broadcast %cst_8 : f32 to vector<32x128xf32>
    %18 = arith.mulf %17, %16 : vector<32x128xf32>
    %19 = math.tanh %18 : vector<32x128xf32>
    %cst_9 = arith.constant 1.000000e+00 : f32
    %20 = vector.broadcast %cst_9 : f32 to vector<32x128xf32>
    %21 = arith.addf %19, %20 : vector<32x128xf32>
    %cst_10 = arith.constant 5.000000e-01 : f32
    %22 = vector.broadcast %cst_10 : f32 to vector<32x128xf32>
    %23 = arith.mulf %22, %21 : vector<32x128xf32>
    %24 = vector.extract_strided_slice %5 {offsets = [0, 384], sizes = [32, 128], strides = [1, 1]} : vector<32x640xf32> to vector<32x128xf32>
    %cst_11 = arith.constant 5.000000e-01 : f32
    %25 = vector.broadcast %cst_11 : f32 to vector<32x128xf32>
    %26 = arith.mulf %25, %24 : vector<32x128xf32>
    %27 = math.tanh %26 : vector<32x128xf32>
    %cst_12 = arith.constant 1.000000e+00 : f32
    %28 = vector.broadcast %cst_12 : f32 to vector<32x128xf32>
    %29 = arith.addf %27, %28 : vector<32x128xf32>
    %cst_13 = arith.constant 5.000000e-01 : f32
    %30 = vector.broadcast %cst_13 : f32 to vector<32x128xf32>
    %31 = arith.mulf %30, %29 : vector<32x128xf32>
    %32 = vector.extract_strided_slice %5 {offsets = [0, 512], sizes = [32, 128], strides = [1, 1]} : vector<32x640xf32> to vector<32x128xf32>
    %cst_14 = arith.constant 5.000000e-01 : f32
    %33 = vector.broadcast %cst_14 : f32 to vector<32x128xf32>
    %34 = arith.mulf %33, %32 : vector<32x128xf32>
    %35 = math.tanh %34 : vector<32x128xf32>
    %cst_15 = arith.constant 1.000000e+00 : f32
    %36 = vector.broadcast %cst_15 : f32 to vector<32x128xf32>
    %37 = arith.addf %35, %36 : vector<32x128xf32>
    %cst_16 = arith.constant 5.000000e-01 : f32
    %38 = vector.broadcast %cst_16 : f32 to vector<32x128xf32>
    %39 = arith.mulf %38, %37 : vector<32x128xf32>
    %c0_17 = arith.constant 0 : index
    %c0_18 = arith.constant 0 : index
    %40 = vector.load %arg2[%c0_17, %c0_18] : memref<32x128xf32, #tpu.memory_space<vmem>>, vector<32x128xf32>
    %c0_19 = arith.constant 0 : index
    %c0_20 = arith.constant 0 : index
    %41 = vector.load %arg3[%c0_19, %c0_20] : memref<32x128xf32, #tpu.memory_space<vmem>>, vector<32x128xf32>
    %42 = arith.mulf %15, %7 : vector<32x128xf32>
    %43 = arith.mulf %23, %40 : vector<32x128xf32>
    %44 = arith.addf %42, %43 : vector<32x128xf32>
    %45 = arith.mulf %31, %41 : vector<32x128xf32>
    %46 = arith.addf %44, %45 : vector<32x128xf32>
    %47 = math.tanh %46 : vector<32x128xf32>
    %48 = arith.mulf %39, %47 : vector<32x128xf32>
    %c0_21 = arith.constant 0 : index
    %c0_22 = arith.constant 0 : index
    %49 = vector.load %arg6[%c0_21, %c0_22] : memref<32x128xf32, #tpu.memory_space<vmem>>, vector<32x128xf32>
    tpu.vector_store %arg6[%c0_21, %c0_22], %48 {strides = array<i32>} : memref<32x128xf32, #tpu.memory_space<vmem>>, vector<32x128xf32>,
    %c0_23 = arith.constant 0 : index
    %c0_24 = arith.constant 0 : index
    %50 = vector.load %arg7[%c0_23, %c0_24] : memref<32x128xf32, #tpu.memory_space<vmem>>, vector<32x128xf32>
    tpu.vector_store %arg7[%c0_23, %c0_24], %46 {strides = array<i32>} : memref<32x128xf32, #tpu.memory_space<vmem>>, vector<32x128xf32>,
    return
  }
  func.func @transform_0(%arg0: i32) -> (i32, i32) {
    %c0_i32 = arith.constant 0 : i32
    %c0_i32_0 = arith.constant 0 : i32
    return %arg0, %c0_i32 : i32, i32
  }
  func.func @transform_1(%arg0: i32) -> (i32, i32) {
    %c0_i32 = arith.constant 0 : i32
    %c0_i32_0 = arith.constant 0 : i32
    return %arg0, %c0_i32 : i32, i32
  }
  func.func @transform_2(%arg0: i32) -> (i32, i32) {
    %c0_i32 = arith.constant 0 : i32
    %c0_i32_0 = arith.constant 0 : i32
    return %arg0, %c0_i32 : i32, i32
  }
  func.func @transform_3(%arg0: i32) -> (i32, i32) {
    %c0_i32 = arith.constant 0 : i32
    %c0_i32_0 = arith.constant 0 : i32
    %c0_i32_1 = arith.constant 0 : i32
    return %c0_i32, %c0_i32_0 : i32, i32
  }
  func.func @transform_4(%arg0: i32) -> (i32, i32) {
    %c0_i32 = arith.constant 0 : i32
    %c0_i32_0 = arith.constant 0 : i32
    %c0_i32_1 = arith.constant 0 : i32
    return %c0_i32, %c0_i32_0 : i32, i32
  }
  func.func @transform_5(%arg0: i32) -> (i32, i32) {
    %c0_i32 = arith.constant 0 : i32
    %c0_i32_0 = arith.constant 0 : i32
    return %arg0, %c0_i32 : i32, i32
  }
  func.func @transform_6(%arg0: i32) -> (i32, i32) {
    %c0_i32 = arith.constant 0 : i32
    %c0_i32_0 = arith.constant 0 : i32
    return %arg0, %c0_i32 : i32, i32
  }
}

</mosaic_0001>

<llo_original>
// kernel: binary_tree_lstm_cell.1
$region0: #{binary_tree_lstm_cell.1}
  #allocation0 [shape = 'u32[]', space=smem, size = 0x4, offset = 0x4, fixed_abs, tag = 'smem constant byte address 0x4 - core index']
  #allocation1 [shape = 'u32[144,128]{1,0:T(1,128)}', space=vmem, size = 0x12000, scoped, tag = 'internal scratch']
  %s0 = inlined_call_operand.vmem [shape: f32[32,256], index: 0, kind: input, shape index: {}]
  %s1 = inlined_call_operand.vmem [shape: f32[32,128], index: 1, kind: input, shape index: {}]
  %s2 = inlined_call_operand.vmem [shape: f32[32,128], index: 2, kind: input, shape index: {}]
  %s3 = inlined_call_operand.hbm [shape: f32[256,640], index: 3, kind: input, shape index: {}]
  %s4 = inlined_call_operand.vmem [shape: f32[1,640], index: 4, kind: input, shape index: {}]
  %s5 = inlined_call_operand.hbm [shape: f32[32,128], index: 5, kind: output, shape index: {0}]
  %s6 = inlined_call_operand.hbm [shape: f32[32,128], index: 6, kind: output, shape index: {1}]
  %7 = xla_tuple %s5, %s6
  %s8 = sld [smem:[#allocation0]]
  $region42: #{binary_tree_lstm_cell.1} parent=0
    _
  %s10 = ssub.s32 1, %s8
  %s11 = scalar_select 0, %s10, %s8
  $region1: #{binary_tree_lstm_cell.1} parent=0
    #allocation2 [shape = 'u8[655360]{0}', space=vmem, size = 0xa0000, scoped, tag = 'input window, operand 3, single buffered']
    #allocation3 [shape = 's32[1]{0}', space=sflag, size = 0x4, scoped, tag = 'scoped memory for binary_tree_lstm_cell.1']
    #allocation4 [shape = 's32[1]{0}', space=sflag, size = 0x4, scoped, tag = 'scoped memory for binary_tree_lstm_cell.1']
    #allocation5 [shape = 'u8[16384]{0}', space=vmem, size = 0x4000, scoped, tag = 'output window, operand 0, single buffered']
    #allocation6 [shape = 'u8[16384]{0}', space=vmem, size = 0x4000, scoped, tag = 'output window, operand 1, single buffered']
    #allocation7 [shape = 's32[1]{0}', space=sflag, size = 0x4, scoped, tag = 'scoped memory for binary_tree_lstm_cell.1']
    %12 = vsyncpa [#allocation3], 0
    %13 = vsyncpa [#allocation4], 0
    %14 = vsyncpa [#allocation7], 0
    // Predicated region
    $region2: #{binary_tree_lstm_cell.1} parent=1 // pred_check
      _
    $region3: #{binary_tree_lstm_cell.1} parent=1 // pred_check_branch
      %16 = sbr.rel (0) target = $region5
    $region4: #{binary_tree_lstm_cell.1} parent=1 // pred_region
      _
    $region5: #{binary_tree_lstm_cell.1} parent=1 // pred_fallthru
      _
    // Predicated region
    $region6: #{binary_tree_lstm_cell.1} parent=1 // pred_check
      _
    $region7: #{binary_tree_lstm_cell.1} parent=1 // pred_check_branch
      %18 = sbr.rel (0) target = $region9
    $region8: #{binary_tree_lstm_cell.1} parent=1 // pred_region
      _
    $region9: #{binary_tree_lstm_cell.1} parent=1 // pred_fallthru
      _
    // Predicated region
    $region10: #{binary_tree_lstm_cell.1} parent=1 // pred_check
      _
    $region11: #{binary_tree_lstm_cell.1} parent=1 // pred_check_branch
      %20 = sbr.rel (0) target = $region13
    $region12: #{binary_tree_lstm_cell.1} parent=1 // pred_region
      _
    $region13: #{binary_tree_lstm_cell.1} parent=1 // pred_fallthru
      _
    // Predicated region
    $region14: #{binary_tree_lstm_cell.1} parent=1 // pred_check
      _
    $region15: #{binary_tree_lstm_cell.1} parent=1 // pred_check_branch
      %22 = sbr.rel (0) target = $region17
    $region16: #{binary_tree_lstm_cell.1} parent=1 // pred_region
      %s24 = ssub.s32 20480, 20480
      %25 = vsyncadd [#allocation3], %s24
      %s26 = sshll.u32 [#allocation2], 4
      %s27 = int_to_ptr.vmem [resolvable:$true] %s26
      %32 = dma.hbm_to_vmem [thread:$0]  %s3, 20480, %s27, [#allocation3], 640, 640, 40
    $region17: #{binary_tree_lstm_cell.1} parent=1 // pred_fallthru
      _
    // Predicated region
    $region18: #{binary_tree_lstm_cell.1} parent=1 // pred_check
      _
    $region19: #{binary_tree_lstm_cell.1} parent=1 // pred_check_branch
      %34 = sbr.rel (0) target = $region21
    $region20: #{binary_tree_lstm_cell.1} parent=1 // pred_region
      _
    $region21: #{binary_tree_lstm_cell.1} parent=1 // pred_fallthru
      _
    // Predicated region
    $region22: #{binary_tree_lstm_cell.1} parent=1 // pred_check
      _
    $region23: #{binary_tree_lstm_cell.1} parent=1 // pred_check_branch
      %36 = sbr.rel (0) target = $region25
    $region24: #{binary_tree_lstm_cell.1} parent=1 // pred_region
      %37 = dma.done [#allocation3], 20480
    $region25: #{binary_tree_lstm_cell.1} parent=1 // pred_fallthru
      _
    %v38 = vld [vmem:[%s0] sm:$0xff]
    %v39 = vld [vmem:[%s0 + $0x8] sm:$0xff]
    %v40 = vld [vmem:[%s0 + $0x10] sm:$0xff]
    %v41 = vld [vmem:[%s0 + $0x18] sm:$0xff]
    %v42 = vld [vmem:[%s0 + $0x20] sm:$0xff]
    %v43 = vld [vmem:[%s0 + $0x28] sm:$0xff]
    %v44 = vld [vmem:[%s0 + $0x30] sm:$0xff]
    %v45 = vld [vmem:[%s0 + $0x38] sm:$0xff]
    %v46 = vld [vmem:[#allocation2] sm:$0xff]
    %v47 = vld [vmem:[#allocation2 + $0x8] sm:$0xff]
    %v48 = vld [vmem:[#allocation2 + $0x10] sm:$0xff]
    %v49 = vld [vmem:[#allocation2 + $0x18] sm:$0xff]
    %v50 = vld [vmem:[#allocation2 + $0x20] sm:$0xff]
    %v51 = vld [vmem:[#allocation2 + $0x28] sm:$0xff]
    %v52 = vld [vmem:[#allocation2 + $0x30] sm:$0xff]
    %v53 = vld [vmem:[#allocation2 + $0x38] sm:$0xff]
    %v54 = vld [vmem:[#allocation2 + $0x40] sm:$0xff]
    %v55 = vld [vmem:[#allocation2 + $0x48] sm:$0xff]
    %v56 = vld [vmem:[#allocation2 + $0x50] sm:$0xff]
    %v57 = vld [vmem:[#allocation2 + $0x58] sm:$0xff]
    %v58 = vld [vmem:[#allocation2 + $0x60] sm:$0xff]
    %v59 = vld [vmem:[#allocation2 + $0x68] sm:$0xff]
    %v60 = vld [vmem:[#allocation2 + $0x70] sm:$0xff]
    %v61 = vld [vmem:[#allocation2 + $0x78] sm:$0xff]
    %v62 = vld [vmem:[#allocation2 + $0x80] sm:$0xff]
    %v63 = vld [vmem:[#allocation2 + $0x88] sm:$0xff]
    %v64 = vld [vmem:[#allocation2 + $0x90] sm:$0xff]
    %v65 = vld [vmem:[#allocation2 + $0x98] sm:$0xff]
    %v66 = vld [vmem:[#allocation2 + $0xa0] sm:$0xff]
    %v67 = vld [vmem:[#allocation2 + $0xa8] sm:$0xff]
    %v68 = vld [vmem:[#allocation2 + $0xb0] sm:$0xff]
    %v69 = vld [vmem:[#allocation2 + $0xb8] sm:$0xff]
    %v70 = vld [vmem:[#allocation2 + $0xc0] sm:$0xff]
    %v71 = vld [vmem:[#allocation2 + $0xc8] sm:$0xff]
    %v72 = vld [vmem:[#allocation2 + $0xd0] sm:$0xff]
    %v73 = vld [vmem:[#allocation2 + $0xd8] sm:$0xff]
    %v74 = vld [vmem:[#allocation2 + $0xe0] sm:$0xff]
    %v75 = vld [vmem:[#allocation2 + $0xe8] sm:$0xff]
    %v76 = vld [vmem:[#allocation2 + $0xf0] sm:$0xff]
    %v77 = vld [vmem:[#allocation2 + $0xf8] sm:$0xff]
    %v78 = vld [vmem:[#allocation2 + $0x100] sm:$0xff]
    %v79 = vld [vmem:[#allocation2 + $0x108] sm:$0xff]
    %v80 = vld [vmem:[#allocation2 + $0x110] sm:$0xff]
    %v81 = vld [vmem:[#allocation2 + $0x118] sm:$0xff]
    %v82 = vld [vmem:[#allocation2 + $0x120] sm:$0xff]
    %v83 = vld [vmem:[#allocation2 + $0x128] sm:$0xff]
    %v84 = vld [vmem:[#allocation2 + $0x130] sm:$0xff]
    %v85 = vld [vmem:[#allocation2 + $0x138] sm:$0xff]
    %v86 = vld [vmem:[#allocation2 + $0x140] sm:$0xff]
    %v87 = vld [vmem:[#allocation2 + $0x148] sm:$0xff]
    %v88 = vld [vmem:[#allocation2 + $0x150] sm:$0xff]
    %v89 = vld [vmem:[#allocation2 + $0x158] sm:$0xff]
    %v90 = vld [vmem:[#allocation2 + $0x160] sm:$0xff]
    %v91 = vld [vmem:[#allocation2 + $0x168] sm:$0xff]
    %v92 = vld [vmem:[#allocation2 + $0x170] sm:$0xff]
    %v93 = vld [vmem:[#allocation2 + $0x178] sm:$0xff]
    %v94 = vld [vmem:[#allocation2 + $0x180] sm:$0xff]
    %v95 = vld [vmem:[#allocation2 + $0x188] sm:$0xff]
    %v96 = vld [vmem:[#allocation2 + $0x190] sm:$0xff]
    %v97 = vld [vmem:[#allocation2 + $0x198] sm:$0xff]
    %v98 = vld [vmem:[#allocation2 + $0x1a0] sm:$0xff]
    %v99 = vld [vmem:[#allocation2 + $0x1a8] sm:$0xff]
    %v100 = vld [vmem:[#allocation2 + $0x1b0] sm:$0xff]
    %v101 = vld [vmem:[#allocation2 + $0x1b8] sm:$0xff]
    %v102 = vld [vmem:[#allocation2 + $0x1c0] sm:$0xff]
    %v103 = vld [vmem:[#allocation2 + $0x1c8] sm:$0xff]
    %v104 = vld [vmem:[#allocation2 + $0x1d0] sm:$0xff]
    %v105 = vld [vmem:[#allocation2 + $0x1d8] sm:$0xff]
    %v106 = vld [vmem:[#allocation2 + $0x1e0] sm:$0xff]
    %v107 = vld [vmem:[#allocation2 + $0x1e8] sm:$0xff]
    %v108 = vld [vmem:[#allocation2 + $0x1f0] sm:$0xff]
    %v109 = vld [vmem:[#allocation2 + $0x1f8] sm:$0xff]
    %v110 = vld [vmem:[#allocation2 + $0x200] sm:$0xff]
    %v111 = vld [vmem:[#allocation2 + $0x208] sm:$0xff]
    %v112 = vld [vmem:[#allocation2 + $0x210] sm:$0xff]
    %v113 = vld [vmem:[#allocation2 + $0x218] sm:$0xff]
    %v114 = vld [vmem:[#allocation2 + $0x220] sm:$0xff]
    %v115 = vld [vmem:[#allocation2 + $0x228] sm:$0xff]
    %v116 = vld [vmem:[#allocation2 + $0x230] sm:$0xff]
    %v117 = vld [vmem:[#allocation2 + $0x238] sm:$0xff]
    %v118 = vld [vmem:[#allocation2 + $0x240] sm:$0xff]
    %v119 = vld [vmem:[#allocation2 + $0x248] sm:$0xff]
    %v120 = vld [vmem:[#allocation2 + $0x250] sm:$0xff]
    %v121 = vld [vmem:[#allocation2 + $0x258] sm:$0xff]
    %v122 = vld [vmem:[#allocation2 + $0x260] sm:$0xff]
    %v123 = vld [vmem:[#allocation2 + $0x268] sm:$0xff]
    %v124 = vld [vmem:[#allocation2 + $0x270] sm:$0xff]
    %v125 = vld [vmem:[#allocation2 + $0x278] sm:$0xff]
    %v126 = vld [vmem:[#allocation2 + $0x280] sm:$0xff]
    %v127 = vld [vmem:[#allocation2 + $0x288] sm:$0xff]
    %v128 = vld [vmem:[#allocation2 + $0x290] sm:$0xff]
    %v129 = vld [vmem:[#allocation2 + $0x298] sm:$0xff]
    %v130 = vld [vmem:[#allocation2 + $0x2a0] sm:$0xff]
    %v131 = vld [vmem:[#allocation2 + $0x2a8] sm:$0xff]
    %v132 = vld [vmem:[#allocation2 + $0x2b0] sm:$0xff]
    %v133 = vld [vmem:[#allocation2 + $0x2b8] sm:$0xff]
    %v134 = vld [vmem:[#allocation2 + $0x2c0] sm:$0xff]
    %v135 = vld [vmem:[#allocation2 + $0x2c8] sm:$0xff]
    %v136 = vld [vmem:[#allocation2 + $0x2d0] sm:$0xff]
    %v137 = vld [vmem:[#allocation2 + $0x2d8] sm:$0xff]
    %v138 = vld [vmem:[#allocation2 + $0x2e0] sm:$0xff]
    %v139 = vld [vmem:[#allocation2 + $0x2e8] sm:$0xff]
    %v140 = vld [vmem:[#allocation2 + $0x2f0] sm:$0xff]
    %v141 = vld [vmem:[#allocation2 + $0x2f8] sm:$0xff]
    %v142 = vld [vmem:[#allocation2 + $0x300] sm:$0xff]
    %v143 = vld [vmem:[#allocation2 + $0x308] sm:$0xff]
    %v144 = vld [vmem:[#allocation2 + $0x310] sm:$0xff]
    %v145 = vld [vmem:[#allocation2 + $0x318] sm:$0xff]
    %v146 = vld [vmem:[#allocation2 + $0x320] sm:$0xff]
    %v147 = vld [vmem:[#allocation2 + $0x328] sm:$0xff]
    %v148 = vld [vmem:[#allocation2 + $0x330] sm:$0xff]
    %v149 = vld [vmem:[#allocation2 + $0x338] sm:$0xff]
    %v150 = vld [vmem:[#allocation2 + $0x340] sm:$0xff]
    %v151 = vld [vmem:[#allocation2 + $0x348] sm:$0xff]
    %v152 = vld [vmem:[#allocation2 + $0x350] sm:$0xff]
    %v153 = vld [vmem:[#allocation2 + $0x358] sm:$0xff]
    %v154 = vld [vmem:[#allocation2 + $0x360] sm:$0xff]
    %v155 = vld [vmem:[#allocation2 + $0x368] sm:$0xff]
    %v156 = vld [vmem:[#allocation2 + $0x370] sm:$0xff]
    %v157 = vld [vmem:[#allocation2 + $0x378] sm:$0xff]
    %v158 = vld [vmem:[#allocation2 + $0x380] sm:$0xff]
    %v159 = vld [vmem:[#allocation2 + $0x388] sm:$0xff]
    %v160 = vld [vmem:[#allocation2 + $0x390] sm:$0xff]
    %v161 = vld [vmem:[#allocation2 + $0x398] sm:$0xff]
    %v162 = vld [vmem:[#allocation2 + $0x3a0] sm:$0xff]
    %v163 = vld [vmem:[#allocation2 + $0x3a8] sm:$0xff]
    %v164 = vld [vmem:[#allocation2 + $0x3b0] sm:$0xff]
    %v165 = vld [vmem:[#allocation2 + $0x3b8] sm:$0xff]
    %v166 = vld [vmem:[#allocation2 + $0x3c0] sm:$0xff]
    %v167 = vld [vmem:[#allocation2 + $0x3c8] sm:$0xff]
    %v168 = vld [vmem:[#allocation2 + $0x3d0] sm:$0xff]
    %v169 = vld [vmem:[#allocation2 + $0x3d8] sm:$0xff]
    %v170 = vld [vmem:[#allocation2 + $0x3e0] sm:$0xff]
    %v171 = vld [vmem:[#allocation2 + $0x3e8] sm:$0xff]
    %v172 = vld [vmem:[#allocation2 + $0x3f0] sm:$0xff]
    %v173 = vld [vmem:[#allocation2 + $0x3f8] sm:$0xff]
    %v174 = vld [vmem:[#allocation2 + $0x400] sm:$0xff]
    %v175 = vld [vmem:[#allocation2 + $0x408] sm:$0xff]
    %v176 = vld [vmem:[#allocation2 + $0x410] sm:$0xff]
    %v177 = vld [vmem:[#allocation2 + $0x418] sm:$0xff]
    %v178 = vld [vmem:[#allocation2 + $0x420] sm:$0xff]
    %v179 = vld [vmem:[#allocation2 + $0x428] sm:$0xff]
    %v180 = vld [vmem:[#allocation2 + $0x430] sm:$0xff]
    %v181 = vld [vmem:[#allocation2 + $0x438] sm:$0xff]
    %v182 = vld [vmem:[#allocation2 + $0x440] sm:$0xff]
    %v183 = vld [vmem:[#allocation2 + $0x448] sm:$0xff]
    %v184 = vld [vmem:[#allocation2 + $0x450] sm:$0xff]
    %v185 = vld [vmem:[#allocation2 + $0x458] sm:$0xff]
    %v186 = vld [vmem:[#allocation2 + $0x460] sm:$0xff]
    %v187 = vld [vmem:[#allocation2 + $0x468] sm:$0xff]
    %v188 = vld [vmem:[#allocation2 + $0x470] sm:$0xff]
    %v189 = vld [vmem:[#allocation2 + $0x478] sm:$0xff]
    %v190 = vld [vmem:[#allocation2 + $0x480] sm:$0xff]
    %v191 = vld [vmem:[#allocation2 + $0x488] sm:$0xff]
    %v192 = vld [vmem:[#allocation2 + $0x490] sm:$0xff]
    %v193 = vld [vmem:[#allocation2 + $0x498] sm:$0xff]
    %v194 = vld [vmem:[#allocation2 + $0x4a0] sm:$0xff]
    %v195 = vld [vmem:[#allocation2 + $0x4a8] sm:$0xff]
    %v196 = vld [vmem:[#allocation2 + $0x4b0] sm:$0xff]
    %v197 = vld [vmem:[#allocation2 + $0x4b8] sm:$0xff]
    %v198 = vld [vmem:[#allocation2 + $0x4c0] sm:$0xff]
    %v199 = vld [vmem:[#allocation2 + $0x4c8] sm:$0xff]
    %v200 = vld [vmem:[#allocation2 + $0x4d0] sm:$0xff]
    %v201 = vld [vmem:[#allocation2 + $0x4d8] sm:$0xff]
    %v202 = vld [vmem:[#allocation2 + $0x4e0] sm:$0xff]
    %v203 = vld [vmem:[#allocation2 + $0x4e8] sm:$0xff]
    %v204 = vld [vmem:[#allocation2 + $0x4f0] sm:$0xff]
    %v205 = vld [vmem:[#allocation2 + $0x4f8] sm:$0xff]
    %v206 = vld [vmem:[%s4] sm:$0x1f]
    %v208 = vlaneseq
    %v209 = vshrl.u32 %v208, 7
    %v210 = vsub.s32 0, %v209
    %v211 = vrot.slane %v206, %v210
    %v212 = vlaneseq
    %v213 = vshrl.u32 %v212, 7
    %v214 = vsub.s32 1, %v213
    %v215 = vrot.slane %v206, %v214
    %v216 = vlaneseq
    %v217 = vshrl.u32 %v216, 7
    %v218 = vsub.s32 2, %v217
    %v219 = vrot.slane %v206, %v218
    %v220 = vlaneseq
    %v221 = vshrl.u32 %v220, 7
    %v222 = vsub.s32 3, %v221
    %v223 = vrot.slane %v206, %v222
    %v224 = vlaneseq
    %v225 = vshrl.u32 %v224, 7
    %v226 = vsub.s32 4, %v225
    %v227 = vrot.slane %v206, %v226
    %233 = vmatprep.subr.mxu0 %v47
    %234 = vmatpush1.msra.mxu0 %v46
    %235 = vmatprep.subr.mxu0 %v52
    %236 = vmatpush1.msra.mxu0 %v51
    %237 = vmatprep.subr.mxu0 %v57
    %238 = vmatpush1.msra.mxu0 %v56
    %239 = vmatprep.subr.mxu0 %v62
    %240 = vmatpush1.msra.mxu0 %v61
    %241 = vmatprep.subr.mxu0 %v67
    %242 = vmatpush1.msra.mxu0 %v66
    %243 = vmatprep.subr.mxu0 %v72
    %244 = vmatpush1.msra.mxu0 %v71
    %245 = vmatprep.subr.mxu0 %v77
    %246 = vmatpush1.msra.mxu0 %v76
    %247 = vmatprep.subr.mxu0 %v82
    %248 = vmatpush1.msra.mxu0 %v81
    %249 = vmatprep.subr.mxu0 %v87
    %250 = vmatpush1.msra.mxu0 %v86
    %251 = vmatprep.subr.mxu0 %v92
    %252 = vmatpush1.msra.mxu0 %v91
    %253 = vmatprep.subr.mxu0 %v97
    %254 = vmatpush1.msra.mxu0 %v96
    %255 = vmatprep.subr.mxu0 %v102
    %256 = vmatpush1.msra.mxu0 %v101
    %257 = vmatprep.subr.mxu0 %v107
    %258 = vmatpush1.msra.mxu0 %v106
    %259 = vmatprep.subr.mxu0 %v112
    %260 = vmatpush1.msra.mxu0 %v111
    %261 = vmatprep.subr.mxu0 %v117
    %262 = vmatpush1.msra.mxu0 %v116
    %263 = vmatprep.subr.mxu0 %v122
    %264 = vmatpush1.msra.mxu0 %v121
    %265 = vmatprep.subr.mxu0 %v127
    %266 = vmatpush1.msra.mxu0 %v126
    %267 = vmatprep.subr.mxu0 %v132
    %268 = vmatpush1.msra.mxu0 %v131
    %269 = vmatprep.subr.mxu0 %v137
    %270 = vmatpush1.msra.mxu0 %v136
    %271 = vmatprep.subr.mxu0 %v142
    %272 = vmatpush1.msra.mxu0 %v141
    %273 = vmatprep.subr.mxu0 %v147
    %274 = vmatpush1.msra.mxu0 %v146
    %275 = vmatprep.subr.mxu0 %v152
    %276 = vmatpush1.msra.mxu0 %v151
    %277 = vmatprep.subr.mxu0 %v157
    %278 = vmatpush1.msra.mxu0 %v156
    %279 = vmatprep.subr.mxu0 %v162
    %280 = vmatpush1.msra.mxu0 %v161
    %281 = vmatprep.subr.mxu0 %v167
    %282 = vmatpush1.msra.mxu0 %v166
    %283 = vmatprep.subr.mxu0 %v172
    %284 = vmatpush1.msra.mxu0 %v171
    %285 = vmatprep.subr.mxu0 %v177
    %286 = vmatpush1.msra.mxu0 %v176
    %287 = vmatprep.subr.mxu0 %v182
    %288 = vmatpush1.msra.mxu0 %v181
    %289 = vmatprep.subr.mxu0 %v187
    %290 = vmatpush1.msra.mxu0 %v186
    %291 = vmatprep.subr.mxu0 %v192
    %292 = vmatpush1.msra.mxu0 %v191
    %293 = vmatprep.subr.mxu0 %v197
    %294 = vmatpush1.msra.mxu0 %v196
    %295 = vmatprep.subr.mxu0 %v202
    %296 = vmatpush1.msra.mxu0 %v201
    %297 = vmatprep.mubr.f32.mxu0 %v39
    %298 = vmatmul.mubr.f32.gmra.mrb[0].mxu0 %v38
    %v299 = vpop.f32.mrb[0].mxu0
    %v300 = vadd.f32 %v211, %v299
    %v301 = vpop.f32.mrb[0].mxu0
    %v302 = vadd.f32 %v215, %v301
    %303 = vmatprep.mubr.f32.mxu0 %v41
    %304 = vmatmul.mubr.f32.gmra.mrb[0].mxu0 %v40
    %v305 = vpop.f32.mrb[0].mxu0
    %v306 = vadd.f32 %v211, %v305
    %v307 = vpop.f32.mrb[0].mxu0
    %v308 = vadd.f32 %v215, %v307
    %309 = vmatprep.mubr.f32.mxu0 %v43
    %310 = vmatmul.mubr.f32.gmra.mrb[0].mxu0 %v42
    %v311 = vpop.f32.mrb[0].mxu0
    %v312 = vadd.f32 %v211, %v311
    %v313 = vpop.f32.mrb[0].mxu0
    %v314 = vadd.f32 %v215, %v313
    %315 = vmatprep.mubr.f32.mxu0 %v45
    %316 = vmatmul.mubr.f32.gmra.mrb[0].mxu0 %v44
    %v317 = vpop.f32.mrb[0].mxu0
    %v318 = vadd.f32 %v211, %v317
    %v319 = vpop.f32.mrb[0].mxu0
    %v320 = vadd.f32 %v215, %v319
    %321 = vdwg.mxu0
    %322 = vmatprep.subr.mxu0 %v49
    %323 = vmatpush1.msra.mxu0 %v48
    %324 = vmatprep.subr.mxu0 %v54
    %325 = vmatpush1.msra.mxu0 %v53
    %326 = vmatprep.subr.mxu0 %v59
    %327 = vmatpush1.msra.mxu0 %v58
    %328 = vmatprep.subr.mxu0 %v64
    %329 = vmatpush1.msra.mxu0 %v63
    %330 = vmatprep.subr.mxu0 %v69
    %331 = vmatpush1.msra.mxu0 %v68
    %332 = vmatprep.subr.mxu0 %v74
    %333 = vmatpush1.msra.mxu0 %v73
    %334 = vmatprep.subr.mxu0 %v79
    %335 = vmatpush1.msra.mxu0 %v78
    %336 = vmatprep.subr.mxu0 %v84
    %337 = vmatpush1.msra.mxu0 %v83
    %338 = vmatprep.subr.mxu0 %v89
    %339 = vmatpush1.msra.mxu0 %v88
    %340 = vmatprep.subr.mxu0 %v94
    %341 = vmatpush1.msra.mxu0 %v93
    %342 = vmatprep.subr.mxu0 %v99
    %343 = vmatpush1.msra.mxu0 %v98
    %344 = vmatprep.subr.mxu0 %v104
    %345 = vmatpush1.msra.mxu0 %v103
    %346 = vmatprep.subr.mxu0 %v109
    %347 = vmatpush1.msra.mxu0 %v108
    %348 = vmatprep.subr.mxu0 %v114
    %349 = vmatpush1.msra.mxu0 %v113
    %350 = vmatprep.subr.mxu0 %v119
    %351 = vmatpush1.msra.mxu0 %v118
    %352 = vmatprep.subr.mxu0 %v124
    %353 = vmatpush1.msra.mxu0 %v123
    %354 = vmatprep.subr.mxu0 %v129
    %355 = vmatpush1.msra.mxu0 %v128
    %356 = vmatprep.subr.mxu0 %v134
    %357 = vmatpush1.msra.mxu0 %v133
    %358 = vmatprep.subr.mxu0 %v139
    %359 = vmatpush1.msra.mxu0 %v138
    %360 = vmatprep.subr.mxu0 %v144
    %361 = vmatpush1.msra.mxu0 %v143
    %362 = vmatprep.subr.mxu0 %v149
    %363 = vmatpush1.msra.mxu0 %v148
    %364 = vmatprep.subr.mxu0 %v154
    %365 = vmatpush1.msra.mxu0 %v153
    %366 = vmatprep.subr.mxu0 %v159
    %367 = vmatpush1.msra.mxu0 %v158
    %368 = vmatprep.subr.mxu0 %v164
    %369 = vmatpush1.msra.mxu0 %v163
    %370 = vmatprep.subr.mxu0 %v169
    %371 = vmatpush1.msra.mxu0 %v168
    %372 = vmatprep.subr.mxu0 %v174
    %373 = vmatpush1.msra.mxu0 %v173
    %374 = vmatprep.subr.mxu0 %v179
    %375 = vmatpush1.msra.mxu0 %v178
    %376 = vmatprep.subr.mxu0 %v184
    %377 = vmatpush1.msra.mxu0 %v183
    %378 = vmatprep.subr.mxu0 %v189
    %379 = vmatpush1.msra.mxu0 %v188
    %380 = vmatprep.subr.mxu0 %v194
    %381 = vmatpush1.msra.mxu0 %v193
    %382 = vmatprep.subr.mxu0 %v199
    %383 = vmatpush1.msra.mxu0 %v198
    %384 = vmatprep.subr.mxu0 %v204
    %385 = vmatpush1.msra.mxu0 %v203
    %386 = vmatprep.mubr.f32.mxu0 %v39
    %387 = vmatmul.mubr.f32.gmra.mrb[0].mxu0 %v38
    %v388 = vpop.f32.mrb[0].mxu0
    %v389 = vadd.f32 %v219, %v388
    %v390 = vpop.f32.mrb[0].mxu0
    %v391 = vadd.f32 %v223, %v390
    %392 = vmatprep.mubr.f32.mxu0 %v41
    %393 = vmatmul.mubr.f32.gmra.mrb[0].mxu0 %v40
    %v394 = vpop.f32.mrb[0].mxu0
    %v395 = vadd.f32 %v219, %v394
    %v396 = vpop.f32.mrb[0].mxu0
    %v397 = vadd.f32 %v223, %v396
    %398 = vmatprep.mubr.f32.mxu0 %v43
    %399 = vmatmul.mubr.f32.gmra.mrb[0].mxu0 %v42
    %v400 = vpop.f32.mrb[0].mxu0
    %v401 = vadd.f32 %v219, %v400
    %v402 = vpop.f32.mrb[0].mxu0
    %v403 = vadd.f32 %v223, %v402
    %404 = vmatprep.mubr.f32.mxu0 %v45
    %405 = vmatmul.mubr.f32.gmra.mrb[0].mxu0 %v44
    %v406 = vpop.f32.mrb[0].mxu0
    %v407 = vadd.f32 %v219, %v406
    %v408 = vpop.f32.mrb[0].mxu0
    %v409 = vadd.f32 %v223, %v408
    %410 = vdwg.mxu0
    %411 = vmatprep.subr.mxu0 0.0
    %412 = vmatpush1.msra.mxu0 %v50
    %413 = vmatprep.subr.mxu0 0.0
    %414 = vmatpush1.msra.mxu0 %v55
    %415 = vmatprep.subr.mxu0 0.0
    %416 = vmatpush1.msra.mxu0 %v60
    %417 = vmatprep.subr.mxu0 0.0
    %418 = vmatpush1.msra.mxu0 %v65
    %419 = vmatprep.subr.mxu0 0.0
    %420 = vmatpush1.msra.mxu0 %v70
    %421 = vmatprep.subr.mxu0 0.0
    %422 = vmatpush1.msra.mxu0 %v75
    %423 = vmatprep.subr.mxu0 0.0
    %424 = vmatpush1.msra.mxu0 %v80
    %425 = vmatprep.subr.mxu0 0.0
    %426 = vmatpush1.msra.mxu0 %v85
    %427 = vmatprep.subr.mxu0 0.0
    %428 = vmatpush1.msra.mxu0 %v90
    %429 = vmatprep.subr.mxu0 0.0
    %430 = vmatpush1.msra.mxu0 %v95
    %431 = vmatprep.subr.mxu0 0.0
    %432 = vmatpush1.msra.mxu0 %v100
    %433 = vmatprep.subr.mxu0 0.0
    %434 = vmatpush1.msra.mxu0 %v105
    %435 = vmatprep.subr.mxu0 0.0
    %436 = vmatpush1.msra.mxu0 %v110
    %437 = vmatprep.subr.mxu0 0.0
    %438 = vmatpush1.msra.mxu0 %v115
    %439 = vmatprep.subr.mxu0 0.0
    %440 = vmatpush1.msra.mxu0 %v120
    %441 = vmatprep.subr.mxu0 0.0
    %442 = vmatpush1.msra.mxu0 %v125
    %443 = vmatprep.subr.mxu0 0.0
    %444 = vmatpush1.msra.mxu0 %v130
    %445 = vmatprep.subr.mxu0 0.0
    %446 = vmatpush1.msra.mxu0 %v135
    %447 = vmatprep.subr.mxu0 0.0
    %448 = vmatpush1.msra.mxu0 %v140
    %449 = vmatprep.subr.mxu0 0.0
    %450 = vmatpush1.msra.mxu0 %v145
    %451 = vmatprep.subr.mxu0 0.0
    %452 = vmatpush1.msra.mxu0 %v150
    %453 = vmatprep.subr.mxu0 0.0
    %454 = vmatpush1.msra.mxu0 %v155
    %455 = vmatprep.subr.mxu0 0.0
    %456 = vmatpush1.msra.mxu0 %v160
    %457 = vmatprep.subr.mxu0 0.0
    %458 = vmatpush1.msra.mxu0 %v165
    %459 = vmatprep.subr.mxu0 0.0
    %460 = vmatpush1.msra.mxu0 %v170
    %461 = vmatprep.subr.mxu0 0.0
    %462 = vmatpush1.msra.mxu0 %v175
    %463 = vmatprep.subr.mxu0 0.0
    %464 = vmatpush1.msra.mxu0 %v180
    %465 = vmatprep.subr.mxu0 0.0
    %466 = vmatpush1.msra.mxu0 %v185
    %467 = vmatprep.subr.mxu0 0.0
    %468 = vmatpush1.msra.mxu0 %v190
    %469 = vmatprep.subr.mxu0 0.0
    %470 = vmatpush1.msra.mxu0 %v195
    %471 = vmatprep.subr.mxu0 0.0
    %472 = vmatpush1.msra.mxu0 %v200
    %473 = vmatprep.subr.mxu0 0.0
    %474 = vmatpush1.msra.mxu0 %v205
    %475 = vmatprep.mubr.f32.mxu0 %v39
    %476 = vmatmul.mubr.f32.gmra.mrb[0].mxu0 %v38
    %v477 = vpop.f32.mrb[0].mxu0
    %v478 = vadd.f32 %v227, %v477
    %v479 = vpop.f32.mrb[0].mxu0
    %480 = vmatprep.mubr.f32.mxu0 %v41
    %481 = vmatmul.mubr.f32.gmra.mrb[0].mxu0 %v40
    %v482 = vpop.f32.mrb[0].mxu0
    %v483 = vadd.f32 %v227, %v482
    %v484 = vpop.f32.mrb[0].mxu0
    %485 = vmatprep.mubr.f32.mxu0 %v43
    %486 = vmatmul.mubr.f32.gmra.mrb[0].mxu0 %v42
    %v487 = vpop.f32.mrb[0].mxu0
    %v488 = vadd.f32 %v227, %v487
    %v489 = vpop.f32.mrb[0].mxu0
    %490 = vmatprep.mubr.f32.mxu0 %v45
    %491 = vmatmul.mubr.f32.gmra.mrb[0].mxu0 %v44
    %v492 = vpop.f32.mrb[0].mxu0
    %v493 = vadd.f32 %v227, %v492
    %v494 = vpop.f32.mrb[0].mxu0
    %495 = vdwg.mxu0
    %v496 = vtanh.pop %v300
    %v497 = vtanh.pop %v306
    %v498 = vtanh.pop %v312
    %v499 = vtanh.pop %v318
    %v500 = vmul.f32 %v302, 0.5
    %v501 = vmul.f32 %v308, 0.5
    %v502 = vmul.f32 %v314, 0.5
    %v503 = vmul.f32 %v320, 0.5
    %v504 = vtanh.pop %v500
    %v505 = vtanh.pop %v501
    %v506 = vtanh.pop %v502
    %v507 = vtanh.pop %v503
    %v508 = vadd.f32 %v504, 1.0
    %v509 = vadd.f32 %v505, 1.0
    %v510 = vadd.f32 %v506, 1.0
    %v511 = vadd.f32 %v507, 1.0
    %v512 = vmul.f32 %v508, 0.5
    %v513 = vmul.f32 %v509, 0.5
    %v514 = vmul.f32 %v510, 0.5
    %v515 = vmul.f32 %v511, 0.5
    %v516 = vmul.f32 %v389, 0.5
    %v517 = vmul.f32 %v395, 0.5
    %v518 = vmul.f32 %v401, 0.5
    %v519 = vmul.f32 %v407, 0.5
    %v520 = vtanh.pop %v516
    %v521 = vtanh.pop %v517
    %v522 = vtanh.pop %v518
    %v523 = vtanh.pop %v519
    %v524 = vadd.f32 %v520, 1.0
    %v525 = vadd.f32 %v521, 1.0
    %v526 = vadd.f32 %v522, 1.0
    %v527 = vadd.f32 %v523, 1.0
    %v528 = vmul.f32 %v524, 0.5
    %v529 = vmul.f32 %v525, 0.5
    %v530 = vmul.f32 %v526, 0.5
    %v531 = vmul.f32 %v527, 0.5
    %v532 = vmul.f32 %v391, 0.5
    %v533 = vmul.f32 %v397, 0.5
    %v534 = vmul.f32 %v403, 0.5
    %v535 = vmul.f32 %v409, 0.5
    %v536 = vtanh.pop %v532
    %v537 = vtanh.pop %v533
    %v538 = vtanh.pop %v534
    %v539 = vtanh.pop %v535
    %v540 = vadd.f32 %v536, 1.0
    %v541 = vadd.f32 %v537, 1.0
    %v542 = vadd.f32 %v538, 1.0
    %v543 = vadd.f32 %v539, 1.0
    %v544 = vmul.f32 %v540, 0.5
    %v545 = vmul.f32 %v541, 0.5
    %v546 = vmul.f32 %v542, 0.5
    %v547 = vmul.f32 %v543, 0.5
    %v548 = vmul.f32 %v478, 0.5
    %v549 = vmul.f32 %v483, 0.5
    %v550 = vmul.f32 %v488, 0.5
    %v551 = vmul.f32 %v493, 0.5
    %v552 = vtanh.pop %v548
    %v553 = vtanh.pop %v549
    %v554 = vtanh.pop %v550
    %v555 = vtanh.pop %v551
    %v556 = vadd.f32 %v552, 1.0
    %v557 = vadd.f32 %v553, 1.0
    %v558 = vadd.f32 %v554, 1.0
    %v559 = vadd.f32 %v555, 1.0
    %v560 = vmul.f32 %v556, 0.5
    %v561 = vmul.f32 %v557, 0.5
    %v562 = vmul.f32 %v558, 0.5
    %v563 = vmul.f32 %v559, 0.5
    %v564 = vld [vmem:[%s1] sm:$0xff]
    %v565 = vld [vmem:[%s1 + $0x8] sm:$0xff]
    %v566 = vld [vmem:[%s1 + $0x10] sm:$0xff]
    %v567 = vld [vmem:[%s1 + $0x18] sm:$0xff]
    %v568 = vld [vmem:[%s2] sm:$0xff]
    %v569 = vld [vmem:[%s2 + $0x8] sm:$0xff]
    %v570 = vld [vmem:[%s2 + $0x10] sm:$0xff]
    %v571 = vld [vmem:[%s2 + $0x18] sm:$0xff]
    %v572 = vmul.f32 %v512, %v496
    %v573 = vmul.f32 %v513, %v497
    %v574 = vmul.f32 %v514, %v498
    %v575 = vmul.f32 %v515, %v499
    %v576 = vmul.f32 %v528, %v564
    %v577 = vmul.f32 %v529, %v565
    %v578 = vmul.f32 %v530, %v566
    %v579 = vmul.f32 %v531, %v567
    %v580 = vadd.f32 %v572, %v576
    %v581 = vadd.f32 %v573, %v577
    %v582 = vadd.f32 %v574, %v578
    %v583 = vadd.f32 %v575, %v579
    %v584 = vmul.f32 %v544, %v568
    %v585 = vmul.f32 %v545, %v569
    %v586 = vmul.f32 %v546, %v570
    %v587 = vmul.f32 %v547, %v571
    %v588 = vadd.f32 %v580, %v584
    %v589 = vadd.f32 %v581, %v585
    %v590 = vadd.f32 %v582, %v586
    %v591 = vadd.f32 %v583, %v587
    %v592 = vtanh.pop %v588
    %v593 = vtanh.pop %v589
    %v594 = vtanh.pop %v590
    %v595 = vtanh.pop %v591
    %v596 = vmul.f32 %v560, %v592
    %v597 = vmul.f32 %v561, %v593
    %v598 = vmul.f32 %v562, %v594
    %v599 = vmul.f32 %v563, %v595
    %600 = vst [vmem:[#allocation5] sm:$0xff] %v596
    %601 = vst [vmem:[#allocation5 + $0x8] sm:$0xff] %v597
    %602 = vst [vmem:[#allocation5 + $0x10] sm:$0xff] %v598
    %603 = vst [vmem:[#allocation5 + $0x18] sm:$0xff] %v599
    %604 = vst [vmem:[#allocation6] sm:$0xff] %v588
    %605 = vst [vmem:[#allocation6 + $0x8] sm:$0xff] %v589
    %606 = vst [vmem:[#allocation6 + $0x10] sm:$0xff] %v590
    %607 = vst [vmem:[#allocation6 + $0x18] sm:$0xff] %v591
    // Predicated region
    $region26: #{binary_tree_lstm_cell.1} parent=1 // pred_check
      _
    $region27: #{binary_tree_lstm_cell.1} parent=1 // pred_check_branch
      %609 = sbr.rel (0) target = $region29
    $region28: #{binary_tree_lstm_cell.1} parent=1 // pred_region
      %s611 = ssub.s32 512, 512
      %612 = vsyncadd [#allocation4], %s611
      %s613 = sshll.u32 [#allocation5], 4
      %s614 = int_to_ptr.vmem [resolvable:$true] %s613
      %619 = dma.vmem_to_hbm [thread:$0]  %s614, 512, %s5, [#allocation4], 128, 128, 8
    $region29: #{binary_tree_lstm_cell.1} parent=1 // pred_fallthru
      _
    // Predicated region
    $region30: #{binary_tree_lstm_cell.1} parent=1 // pred_check
      _
    $region31: #{binary_tree_lstm_cell.1} parent=1 // pred_check_branch
      %621 = sbr.rel (0) target = $region33
    $region32: #{binary_tree_lstm_cell.1} parent=1 // pred_region
      %s623 = ssub.s32 512, 512
      %624 = vsyncadd [#allocation7], %s623
      %s625 = sshll.u32 [#allocation6], 4
      %s626 = int_to_ptr.vmem [resolvable:$true] %s625
      %631 = dma.vmem_to_hbm [thread:$0]  %s626, 512, %s6, [#allocation7], 128, 128, 8
    $region33: #{binary_tree_lstm_cell.1} parent=1 // pred_fallthru
      _
    // Predicated region
    $region34: #{binary_tree_lstm_cell.1} parent=1 // pred_check
      _
    $region35: #{binary_tree_lstm_cell.1} parent=1 // pred_check_branch
      %633 = sbr.rel (0) target = $region37
    $region36: #{binary_tree_lstm_cell.1} parent=1 // pred_region
      %634 = dma.done [#allocation4], 512
    $region37: #{binary_tree_lstm_cell.1} parent=1 // pred_fallthru
      _
    // Predicated region
    $region38: #{binary_tree_lstm_cell.1} parent=1 // pred_check
      _
    $region39: #{binary_tree_lstm_cell.1} parent=1 // pred_check_branch
      %636 = sbr.rel (0) target = $region41
    $region40: #{binary_tree_lstm_cell.1} parent=1 // pred_region
      %637 = dma.done [#allocation7], 512
    $region41: #{binary_tree_lstm_cell.1} parent=1 // pred_fallthru
      _
    %638 = vsyncpa [#allocation3], 1
    %639 = vsyncpa [#allocation4], 1
    %640 = vsyncpa [#allocation7], 1

</llo_original>
